<compile_context>
chip_gen: v5e
topology: v5e:2x2
jax: 0.10.0
libtpu: 0.0.40
codegen_flags: <defaults>
</compile_context>

<pallas_src>
import math
import functools

import jax
import jax.numpy as jnp
from jax.experimental import pallas as pl
from jax.experimental.pallas import tpu as pltpu


# ----------------------------------------------------------------------------
# Kernels (operate on lane-dense 2D views: (row_tile, B*D))
# ----------------------------------------------------------------------------
def _pe_add_kernel(x_ref, pe_ref, o_ref):
    y = x_ref[...].astype(jnp.float32) + pe_ref[...].astype(jnp.float32)
    o_ref[...] = y.astype(o_ref.dtype)


def _pe_add_dropout_kernel(x_ref, pe_ref, bits_ref, o_ref, *, threshold, scale):
    # Fused positional-encoding add + inverted dropout.
    # keep iff bits >= threshold, P(keep) = 1 - rate; scale = 1 / (1 - rate).
    y = x_ref[...].astype(jnp.float32) + pe_ref[...].astype(jnp.float32)
    keep = (bits_ref[...] >= jnp.uint32(threshold)).astype(jnp.float32)
    o_ref[...] = (y * (keep * jnp.float32(scale))).astype(o_ref.dtype)


# ----------------------------------------------------------------------------
# Parameter / buffer construction (mirrors PositionalEncoding.__init__)
# ----------------------------------------------------------------------------
def make_pe_buffer(d_model, max_len=90, dtype=jnp.float32):
    position = jnp.arange(max_len, dtype=jnp.float32)[:, None]                  # (max_len, 1)
    div_term = jnp.exp(
        jnp.arange(0, d_model, 2, dtype=jnp.float32) * (-math.log(10000.0) / d_model)
    )                                                                            # (d_model/2,)
    pe = jnp.zeros((max_len, d_model), dtype=jnp.float32)
    pe = pe.at[:, 0::2].set(jnp.sin(position * div_term))
    pe = pe.at[:, 1::2].set(jnp.cos(position * div_term))
    # unsqueeze(0).transpose(0, 1) -> (max_len, 1, d_model)
    return pe[:, None, :].astype(dtype)


# ----------------------------------------------------------------------------
# Tiling helper
# ----------------------------------------------------------------------------
def _choose_row_tile(n_rows, row_bytes, target_tile_bytes=2 << 20):
    """Row tile: multiple of 8 (or full extent), divides n_rows, per-tile slab
    kept near ~2 MiB so double-buffered x/pe/out(/bits) fit the 32 MiB scoped
    VMEM default on every generation (incl. v7x's 64 MiB physical VMEM)."""
    if n_rows % 8 != 0:
        return n_rows  # full-extent block is always a legal block shape
    budget_rows = max(8, (target_tile_bytes // max(row_bytes, 1)) // 8 * 8)
    ts = min(n_rows, budget_rows)
    while n_rows % ts != 0:
        ts -= 8
    return max(ts, 8)


# ----------------------------------------------------------------------------
# Forward wrapper
# ----------------------------------------------------------------------------
def positional_encoding(x, pe, *, dropout_rate=0.1, train=False, rng_key=None,
                        row_tile=None):
    """x: (S, B, D) ; pe: (max_len, 1, D).  Returns dropout(x + pe[:S])."""
    S, B, D = x.shape
    max_len = pe.shape[0]
    if S > max_len:
        raise ValueError(f"sequence length {S} exceeds max_len {max_len}")

    dtype = x.dtype
    itemsize = jnp.dtype(dtype).itemsize
    BD = B * D

    # Lane-dense views: fold (B, D) into the trailing axis.  x reshape is a
    # free view; pe is broadcast over batch once in the wrapper (tiny op).
    x2 = x.reshape(S, BD)
    pe2 = jnp.broadcast_to(pe[:S].astype(dtype), (S, B, D)).reshape(S, BD)

    if row_tile is None:
        row_tile = _choose_row_tile(S, BD * itemsize)
    ts = min(int(row_tile), S)
    grid = (pl.cdiv(S, ts),)

    blk = pl.BlockSpec((ts, BD), lambda i: (i, 0))
    cparams = pltpu.CompilerParams(dimension_semantics=("parallel",))

    if (not train) or dropout_rate == 0.0:
        # Eval mode: dropout is the identity (matches nn.Dropout in eval()).
        cost = pl.CostEstimate(flops=S * BD, transcendentals=0,
                               bytes_accessed=3 * S * BD * itemsize)
        out2 = pl.pallas_call(
            _pe_add_kernel,
            out_shape=jax.ShapeDtypeStruct((S, BD), dtype),
            grid_spec=pltpu.PrefetchScalarGridSpec(
                num_scalar_prefetch=0,
                grid=grid,
                in_specs=[blk, blk],
                out_specs=blk,
            ),
            compiler_params=cparams,
            cost_estimate=cost,
        )(x2, pe2)
        return out2.reshape(S, B, D)

    if dropout_rate >= 1.0:
        return jnp.zeros_like(x)
    if rng_key is None:
        rng_key = jax.random.PRNGKey(0)

    # Raw uint32 randoms; integer threshold compare happens in-kernel.
    bits = jax.random.bits(rng_key, (S, BD), dtype=jnp.uint32)
    threshold = min(int(round(float(dropout_rate) * 2 ** 32)), 2 ** 32 - 1)
    scale = 1.0 / (1.0 - float(dropout_rate))

    kernel = functools.partial(_pe_add_dropout_kernel,
                               threshold=threshold, scale=scale)
    cost = pl.CostEstimate(flops=3 * S * BD, transcendentals=0,
                           bytes_accessed=3 * S * BD * itemsize + S * BD * 4)
    out2 = pl.pallas_call(
        kernel,
        out_shape=jax.ShapeDtypeStruct((S, BD), dtype),
        grid_spec=pltpu.PrefetchScalarGridSpec(
            num_scalar_prefetch=0,
            grid=grid,
            in_specs=[blk, blk, blk],
            out_specs=blk,
        ),
        compiler_params=cparams,
        cost_estimate=cost,
    )(x2, pe2, bits)
    return out2.reshape(S, B, D)


# ----------------------------------------------------------------------------
# Main
# ----------------------------------------------------------------------------
if __name__ == "__main__":
    seq_len, batch, d_model, max_len = 64, 2, 32, 90
    dropout_p = 0.1

    key = jax.random.PRNGKey(0)
    x = jax.random.normal(key, (seq_len, batch, d_model), dtype=jnp.float32)
    pe = make_pe_buffer(d_model, max_len=max_len)
    ref = x + pe[:seq_len]

    # Eval mode (dropout == identity); row_tile=16 -> grid=(4,) exercises the
    # tiled, double-buffered path.
    out_eval = positional_encoding(x, pe, dropout_rate=dropout_p, train=False,
                                   row_tile=16)
    out_eval = jax.block_until_ready(out_eval)
    assert out_eval.shape == (seq_len, batch, d_model)
    assert jnp.allclose(out_eval, ref, atol=1e-6, rtol=1e-6)

    # bf16 in/out (add done in f32 inside the kernel) — halves HBM bytes.
    out_bf16 = positional_encoding(x.astype(jnp.bfloat16), pe,
                                   dropout_rate=dropout_p, train=False,
                                   row_tile=16)
    out_bf16 = jax.block_until_ready(out_bf16)
    assert out_bf16.dtype == jnp.bfloat16
    assert jnp.allclose(out_bf16.astype(jnp.float32), ref, atol=5e-2, rtol=5e-2)

    # Training mode: fused add + inverted dropout.
    drop_key = jax.random.PRNGKey(123)
    out_train = positional_encoding(x, pe, dropout_rate=dropout_p, train=True,
                                    rng_key=drop_key, row_tile=16)
    out_train = jax.block_until_ready(out_train)
    assert out_train.shape == (seq_len, batch, d_model)
    assert bool(jnp.all(jnp.isfinite(out_train)))

    # Recompute the exact keep mask the wrapper used and check element-wise.
    threshold = min(int(round(dropout_p * 2 ** 32)), 2 ** 32 - 1)
    bits = jax.random.bits(drop_key, (seq_len, batch * d_model), dtype=jnp.uint32)
    keep = (bits >= jnp.uint32(threshold)).reshape(seq_len, batch, d_model)
    expected = jnp.where(keep, ref / (1.0 - dropout_p), 0.0)
    assert jnp.allclose(out_train, expected, atol=1e-5, rtol=1e-5)

    drop_frac = 1.0 - float(jnp.mean(keep.astype(jnp.float32)))
    assert 0.03 < drop_frac < 0.20  # ~10% expected on 4096 samples

    print("KERNEL_OK")
</pallas_src>

<mosaic_0001>
module attributes {stable_mosaic.version = 11 : i64} {
  func.func @_pe_add_kernel(%arg0: i32, %arg1: memref<16x64xf32, #tpu.memory_space<vmem>>, %arg2: memref<16x64xf32, #tpu.memory_space<vmem>>, %arg3: memref<16x64xf32, #tpu.memory_space<vmem>>) attributes {dimension_semantics = [#tpu.dimension_semantics<parallel>], iteration_bounds = array<i64: 4>, scalar_prefetch = 0 : i64, scratch_operands = 0 : i64, tpu.core_type = #tpu.core_type<tc>, window_params = [{transform_indices = @transform_0, window_bounds = array<i64: 16, 64>}, {transform_indices = @transform_1, window_bounds = array<i64: 16, 64>}, {transform_indices = @transform_2, window_bounds = array<i64: 16, 64>}]} {
    %c0 = arith.constant 0 : index
    %c0_0 = arith.constant 0 : index
    %0 = vector.load %arg1[%c0, %c0_0] : memref<16x64xf32, #tpu.memory_space<vmem>>, vector<16x64xf32>
    %c0_1 = arith.constant 0 : index
    %c0_2 = arith.constant 0 : index
    %1 = vector.load %arg2[%c0_1, %c0_2] : memref<16x64xf32, #tpu.memory_space<vmem>>, vector<16x64xf32>
    %2 = arith.addf %0, %1 : vector<16x64xf32>
    %c0_3 = arith.constant 0 : index
    %c0_4 = arith.constant 0 : index
    %3 = vector.load %arg3[%c0_3, %c0_4] : memref<16x64xf32, #tpu.memory_space<vmem>>, vector<16x64xf32>
    tpu.vector_store %arg3[%c0_3, %c0_4], %2 {strides = array<i32>} : memref<16x64xf32, #tpu.memory_space<vmem>>, vector<16x64xf32>,
    return
  }
  func.func @transform_0(%arg0: i32) -> (i32, i32) {
    %c0_i32 = arith.constant 0 : i32
    %c0_i32_0 = arith.constant 0 : i32
    return %arg0, %c0_i32 : i32, i32
  }
  func.func @transform_1(%arg0: i32) -> (i32, i32) {
    %c0_i32 = arith.constant 0 : i32
    %c0_i32_0 = arith.constant 0 : i32
    return %arg0, %c0_i32 : i32, i32
  }
  func.func @transform_2(%arg0: i32) -> (i32, i32) {
    %c0_i32 = arith.constant 0 : i32
    %c0_i32_0 = arith.constant 0 : i32
    return %arg0, %c0_i32 : i32, i32
  }
}

</mosaic_0001>

<llo_original>
// kernel: tpu_custom_call.1
$region0: #{tpu_custom_call.1}
  #allocation0 [shape = 'u32[]', space=smem, size = 0x4, offset = 0x4, fixed_abs, tag = 'smem constant byte address 0x4 - core index']
  #allocation1 [shape = 'u32[72,128]{1,0:T(1,128)}', space=vmem, size = 0x9000, scoped, tag = 'internal scratch']
  %s0 = inlined_call_operand.hbm [shape: f32[64,64], index: 0, kind: input, shape index: {}]
  %s1 = inlined_call_operand.hbm [shape: f32[64,64], index: 1, kind: input, shape index: {}]
  %s2 = inlined_call_operand.hbm [shape: f32[64,64], index: 2, kind: output, shape index: {}]
  %s3 = sld [smem:[#allocation0]]
  $region49: #{tpu_custom_call.1} parent=0
    _
  %s5 = ssub.s32 1, %s3
  %s6 = scalar_select 0, %s5, %s3
  $region1: #{tpu_custom_call.1} parent=0
    #allocation2 [shape = 'u8[16384]{0}', space=vmem, size = 0x4000, scoped, tag = 'input window, operand 0']
    #allocation3 [shape = 's32[2]{0}', space=sflag, size = 0x8, scoped, tag = 'scoped memory for tpu_custom_call.1']
    #allocation4 [shape = 's32[2]{0}', space=sflag, size = 0x8, scoped, tag = 'scoped memory for tpu_custom_call.1']
    #allocation5 [shape = 'u8[16384]{0}', space=vmem, size = 0x4000, scoped, tag = 'input window, operand 1']
    #allocation6 [shape = 's32[2]{0}', space=sflag, size = 0x8, scoped, tag = 'scoped memory for tpu_custom_call.1']
    #allocation7 [shape = 'u8[16384]{0}', space=vmem, size = 0x4000, scoped, tag = 'output window, operand 0']
    %7 = vsyncpa [#allocation3], 0
    %s8 = scalar_lea.sflag [#allocation3], 1
    %9 = vsyncpa %s8, 0
    %10 = vsyncpa [#allocation6], 0
    %s11 = scalar_lea.sflag [#allocation6], 1
    %12 = vsyncpa %s11, 0
    %13 = vsyncpa [#allocation4], 0
    %s14 = scalar_lea.sflag [#allocation4], 1
    %15 = vsyncpa %s14, 0
    loop: start=0, step=1, limit=6
    $region2: #{tpu_custom_call.1} parent=1 // loop_pre_header
      _
    $region3: #{tpu_custom_call.1} parent=1 // loop_header
      %s17 = sphi 0, %s21
      %p18 = scmp.ge.s32.totalorder %s17, 6
      %s27 = sphi 0, %s29
      %s30 = sphi 0, %s27
      %s31 = sphi 0, %s30
      %s47 = sphi 0, %s31
      %s53 = sphi 0, %s55
      %s56 = sphi 0, %s53
      %s57 = sphi 0, %s56
      %s73 = sphi 0, %s57
      %s79 = sphi 0, %s81
      %s82 = sphi 0, %s79
      %s83 = sphi 0, %s82
      %s99 = sphi 0, %s83
    $region4: #{tpu_custom_call.1} parent=1 // loop_header_branch
      %20 = sbr.rel (%p18) target = $region8
    $region5: #{tpu_custom_call.1} parent=1 // loop_body
      %s22 = ssub.s32 %s17, 1
      %s23 = ssub.s32 %s17, 2
      %s24 = sadd.s32 %s17, 1
      %s25 = ssub.s32 %s17, %s24
      %p26 = scmp.eq.s32.totalorder %s25, 0
      %s28 = sadd.s32 %s27, 1
      %s29 = scalar_select %p26, %s27, %s28
      %p32 = pneg %p26
      %p33 = scmp.eq.s32.totalorder %s17, 3
      %p34 = por %p32, %p33
      %p35 = scmp.ne.s32.totalorder %s27, %s30
      %p36 = scmp.eq.s32.totalorder %s17, 0
      %p37 = por %p35, %p36
      %p38 = scmp.ne.s32.totalorder %s27, %s30
      %p39 = scmp.eq.s32.totalorder %s22, 3
      %p40 = por %p38, %p39
      %p41 = scmp.ne.s32.totalorder %s30, %s31
      %p42 = scmp.eq.s32.totalorder %s22, 0
      %p43 = por %p41, %p42
      %p44 = scmp.ne.s32.totalorder %s30, %s31
      %p45 = scmp.eq.s32.totalorder %s23, 3
      %p46 = por %p44, %p45
      %p48 = scmp.ne.s32.totalorder %s31, %s47
      %p49 = scmp.eq.s32.totalorder %s23, 0
      %p50 = por %p48, %p49
      %s51 = ssub.s32 %s17, %s24
      %p52 = scmp.eq.s32.totalorder %s51, 0
      %s54 = sadd.s32 %s53, 1
      %s55 = scalar_select %p52, %s53, %s54
      %p58 = pneg %p52
      %p59 = scmp.eq.s32.totalorder %s17, 3
      %p60 = por %p58, %p59
      %p61 = scmp.ne.s32.totalorder %s53, %s56
      %p62 = scmp.eq.s32.totalorder %s17, 0
      %p63 = por %p61, %p62
      %p64 = scmp.ne.s32.totalorder %s53, %s56
      %p65 = scmp.eq.s32.totalorder %s22, 3
      %p66 = por %p64, %p65
      %p67 = scmp.ne.s32.totalorder %s56, %s57
      %p68 = scmp.eq.s32.totalorder %s22, 0
      %p69 = por %p67, %p68
      %p70 = scmp.ne.s32.totalorder %s56, %s57
      %p71 = scmp.eq.s32.totalorder %s23, 3
      %p72 = por %p70, %p71
      %p74 = scmp.ne.s32.totalorder %s57, %s73
      %p75 = scmp.eq.s32.totalorder %s23, 0
      %p76 = por %p74, %p75
      %s77 = ssub.s32 %s17, %s24
      %p78 = scmp.eq.s32.totalorder %s77, 0
      %s80 = sadd.s32 %s79, 1
      %s81 = scalar_select %p78, %s79, %s80
      %p84 = pneg %p78
      %p85 = scmp.eq.s32.totalorder %s17, 3
      %p86 = por %p84, %p85
      %p87 = scmp.ne.s32.totalorder %s79, %s82
      %p88 = scmp.eq.s32.totalorder %s17, 0
      %p89 = por %p87, %p88
      %p90 = scmp.ne.s32.totalorder %s79, %s82
      %p91 = scmp.eq.s32.totalorder %s22, 3
      %p92 = por %p90, %p91
      %p93 = scmp.ne.s32.totalorder %s82, %s83
      %p94 = scmp.eq.s32.totalorder %s22, 0
      %p95 = por %p93, %p94
      %p96 = scmp.ne.s32.totalorder %s82, %s83
      %p97 = scmp.eq.s32.totalorder %s23, 3
      %p98 = por %p96, %p97
      %p100 = scmp.ne.s32.totalorder %s83, %s99
      %p101 = scmp.eq.s32.totalorder %s23, 0
      %p102 = por %p100, %p101
      %p103 = scmp.le.s32.totalorder 1, %s17
      %p104 = scmp.lt.s32.totalorder %s17, 5
      %p105 = pnand %p103, %p104
      %p106 = pneg %p105
      // Predicated region
      $region9: #{tpu_custom_call.1} parent=5 // pred_check
        _
      $region10: #{tpu_custom_call.1} parent=5 // pred_check_branch
        %108 = sbr.rel (%p105) target = $region12
      $region11: #{tpu_custom_call.1} parent=5 // pred_region
        %s109 = ssub.s32 %s17, 1
      $region12: #{tpu_custom_call.1} parent=5 // pred_fallthru
        _
      %p110 = scmp.lt.s32.totalorder %s17, 4
      // Predicated region
      $region13: #{tpu_custom_call.1} parent=5 // pred_check
        %p111 = pneg %p110
      $region14: #{tpu_custom_call.1} parent=5 // pred_check_branch
        %113 = sbr.rel (%p111) target = $region16
      $region15: #{tpu_custom_call.1} parent=5 // pred_region
        // Predicated region
        $region17: #{tpu_custom_call.1} parent=15 // pred_check
          %p114 = pneg %p37
        $region18: #{tpu_custom_call.1} parent=15 // pred_check_branch
          %116 = sbr.rel (%p114) target = $region20
        $region19: #{tpu_custom_call.1} parent=15 // pred_region
          %s117 = sand.u32 %s27, 1
          %s118 = scalar_lea.sflag [#allocation3], %s117
          %s119 = sand.u32 %s27, 1
          %s120 = smul.addr %s119, 16
          %s121 = scalar_lea.vmem [#allocation2], %s120
          %s122 = smul.u32 2, %s17
          %124 = vsyncadd %s118, 0
          %s125 = smul.addr %s122, 8
          %s126 = scalar_lea.hbm %s0, %s125
          %s127 = sshll.u32 %s126, 4
          %s128 = int_to_ptr.hbm [resolvable:$true] %s127
          %s129 = sshll.u32 %s121, 4
          %s130 = int_to_ptr.vmem [resolvable:$true] %s129
          %135 = dma.hbm_to_vmem [thread:$0]  %s128, 256, %s130, %s118, 128, 128, 8
        $region20: #{tpu_custom_call.1} parent=15 // pred_fallthru
          _
        // Predicated region
        $region21: #{tpu_custom_call.1} parent=15 // pred_check
          %p136 = pneg %p63
        $region22: #{tpu_custom_call.1} parent=15 // pred_check_branch
          %138 = sbr.rel (%p136) target = $region24
        $region23: #{tpu_custom_call.1} parent=15 // pred_region
          %s139 = sand.u32 %s53, 1
          %s140 = scalar_lea.sflag [#allocation6], %s139
          %s141 = sand.u32 %s53, 1
          %s142 = smul.addr %s141, 16
          %s143 = scalar_lea.vmem [#allocation5], %s142
          %s144 = smul.u32 2, %s17
          %146 = vsyncadd %s140, 0
          %s147 = smul.addr %s144, 8
          %s148 = scalar_lea.hbm %s1, %s147
          %s149 = sshll.u32 %s148, 4
          %s150 = int_to_ptr.hbm [resolvable:$true] %s149
          %s151 = sshll.u32 %s143, 4
          %s152 = int_to_ptr.vmem [resolvable:$true] %s151
          %157 = dma.hbm_to_vmem [thread:$0]  %s150, 256, %s152, %s140, 128, 128, 8
        $region24: #{tpu_custom_call.1} parent=15 // pred_fallthru
          _
      $region16: #{tpu_custom_call.1} parent=5 // pred_fallthru
        _
      %p158 = scmp.le.s32.totalorder 1, %s17
      %p159 = scmp.lt.s32.totalorder %s17, 5
      %p160 = pnand %p158, %p159
      %p161 = pneg %p160
      // Predicated region
      $region25: #{tpu_custom_call.1} parent=5 // pred_check
        _
      $region26: #{tpu_custom_call.1} parent=5 // pred_check_branch
        %163 = sbr.rel (%p160) target = $region28
      $region27: #{tpu_custom_call.1} parent=5 // pred_region
        %s164 = ssub.s32 %s17, 1
        %s165 = sand.u32 %s30, 1
        %s166 = scalar_lea.sflag [#allocation3], %s165
        %s167 = sand.u32 %s30, 1
        %s168 = smul.addr %s167, 16
        %s169 = scalar_lea.vmem [#allocation2], %s168
        // Predicated region
        $region29: #{tpu_custom_call.1} parent=27 // pred_check
          %p170 = pneg %p43
        $region30: #{tpu_custom_call.1} parent=27 // pred_check_branch
          %172 = sbr.rel (%p170) target = $region32
        $region31: #{tpu_custom_call.1} parent=27 // pred_region
          %174 = dma.done %s166, 256
        $region32: #{tpu_custom_call.1} parent=27 // pred_fallthru
          _
        %s175 = sand.u32 %s56, 1
        %s176 = scalar_lea.sflag [#allocation6], %s175
        %s177 = sand.u32 %s56, 1
        %s178 = smul.addr %s177, 16
        %s179 = scalar_lea.vmem [#allocation5], %s178
        // Predicated region
        $region33: #{tpu_custom_call.1} parent=27 // pred_check
          %p180 = pneg %p69
        $region34: #{tpu_custom_call.1} parent=27 // pred_check_branch
          %182 = sbr.rel (%p180) target = $region36
        $region35: #{tpu_custom_call.1} parent=27 // pred_region
          %184 = dma.done %s176, 256
        $region36: #{tpu_custom_call.1} parent=27 // pred_fallthru
          _
        %s185 = sand.u32 %s30, 1
        %s186 = scalar_lea.sflag [#allocation3], %s185
        %s187 = sand.u32 %s30, 1
        %s188 = smul.addr %s187, 16
        %s189 = scalar_lea.vmem [#allocation2], %s188
        %p190 = pneg %p43
        %p191 = pneg %p40
        %s192 = sand.u32 %s56, 1
        %s193 = scalar_lea.sflag [#allocation6], %s192
        %s194 = sand.u32 %s56, 1
        %s195 = smul.addr %s194, 16
        %s196 = scalar_lea.vmem [#allocation5], %s195
        %p197 = pneg %p69
        %p198 = pneg %p66
        %p199 = pneg %p95
        %p200 = pneg %p92
        %s201 = sand.u32 %s82, 1
        %s202 = scalar_lea.sflag [#allocation4], %s201
        %s203 = sand.u32 %s82, 1
        %s204 = smul.addr %s203, 16
        %s205 = scalar_lea.vmem [#allocation7], %s204
        %s206 = smul.u32 2, %s22
        %s207 = smul.u32 2, %s22
        %s208 = smul.u32 2, %s22
        %v209 = vld [vmem:[%s169] sm:$0xff]
        %v210 = vld [vmem:[%s169 + $0x8] sm:$0xff]
        %v211 = vld [vmem:[%s179] sm:$0xff]
        %v212 = vld [vmem:[%s179 + $0x8] sm:$0xff]
        %v213 = vadd.f32 %v209, %v211
        %v214 = vadd.f32 %v210, %v212
        %vm215 = vcmask 523264
        %216 = vst.msk [vmem:[%s205] sm:$0xff] %vm215, %v213
        %217 = vst.msk [vmem:[%s205 + $0x8] sm:$0xff] %vm215, %v214
        %s218 = sand.u32 %s82, 1
        %s219 = scalar_lea.sflag [#allocation4], %s218
        %s220 = sand.u32 %s82, 1
        %s221 = smul.addr %s220, 16
        %s222 = scalar_lea.vmem [#allocation7], %s221
        // Predicated region
        $region37: #{tpu_custom_call.1} parent=27 // pred_check
          %p223 = pneg %p92
        $region38: #{tpu_custom_call.1} parent=27 // pred_check_branch
          %225 = sbr.rel (%p223) target = $region40
        $region39: #{tpu_custom_call.1} parent=27 // pred_region
          %s226 = smul.u32 2, %s22
          %228 = vsyncadd %s219, 0
          %s229 = smul.addr %s226, 8
          %s230 = scalar_lea.hbm %s2, %s229
          %s231 = sshll.u32 %s222, 4
          %s232 = int_to_ptr.vmem [resolvable:$true] %s231
          %s233 = sshll.u32 %s230, 4
          %s234 = int_to_ptr.hbm [resolvable:$true] %s233
          %239 = dma.vmem_to_hbm [thread:$0]  %s232, 256, %s234, %s219, 128, 128, 8
        $region40: #{tpu_custom_call.1} parent=27 // pred_fallthru
          _
      $region28: #{tpu_custom_call.1} parent=5 // pred_fallthru
        _
      %p240 = scmp.le.s32.totalorder 2, %s17
      // Predicated region
      $region41: #{tpu_custom_call.1} parent=5 // pred_check
        %p241 = pneg %p240
      $region42: #{tpu_custom_call.1} parent=5 // pred_check_branch
        %243 = sbr.rel (%p241) target = $region44
      $region43: #{tpu_custom_call.1} parent=5 // pred_region
        %s244 = ssub.s32 %s17, 2
        // Predicated region
        $region45: #{tpu_custom_call.1} parent=43 // pred_check
          %p245 = pneg %p98
        $region46: #{tpu_custom_call.1} parent=43 // pred_check_branch
          %247 = sbr.rel (%p245) target = $region48
        $region47: #{tpu_custom_call.1} parent=43 // pred_region
          %s248 = sand.u32 %s83, 1
          %s249 = scalar_lea.sflag [#allocation4], %s248
          %s250 = sand.u32 %s83, 1
          %s251 = smul.addr %s250, 16
          %s252 = scalar_lea.vmem [#allocation7], %s251
          %254 = dma.done %s249, 256
        $region48: #{tpu_custom_call.1} parent=43 // pred_fallthru
          _
      $region44: #{tpu_custom_call.1} parent=5 // pred_fallthru
        _
    $region6: #{tpu_custom_call.1} parent=1 // loop_footer
      %s21 = sadd.s32 1, %s17
    $region7: #{tpu_custom_call.1} parent=1 // loop_footer_branch
      %16 = sbr.rel target = $region3
    $region8: #{tpu_custom_call.1} parent=1 // loop_exit
      _
    %255 = vsyncpa [#allocation3], 1
    %s256 = scalar_lea.sflag [#allocation3], 1
    %257 = vsyncpa %s256, 1
    %258 = vsyncpa [#allocation6], 1
    %s259 = scalar_lea.sflag [#allocation6], 1
    %260 = vsyncpa %s259, 1
    %261 = vsyncpa [#allocation4], 1
    %s262 = scalar_lea.sflag [#allocation4], 1
    %263 = vsyncpa %s262, 1

</llo_original>
